<compile_context>
chip_gen: v5e
topology: v5e:2x2
jax: 0.10.0
libtpu: 0.0.40
codegen_flags: <defaults>
</compile_context>

<pallas_src>
import jax
import jax.numpy as jnp
from jax.experimental import pallas as pl
from jax.experimental.pallas import tpu as pltpu

INPUT_SIZE = 2
HIDDEN_SIZE = 270
H_PAD = 384          # next multiple of 128 >= 270 -> lane-dense output stores


def slp_kernel(x_ref, w_ref, b_ref, o_ref):
    # x_ref: (TB, 2), w_ref: (2, H_PAD), b_ref: (1, H_PAD), o_ref: (TB, H_PAD)
    x = x_ref[...]
    w = w_ref[...]
    b = b_ref[...]
    # K=2 contraction as two broadcast-FMAs on the VPU (MXU skipped on purpose).
    y = x[:, 0:1] * w[0:1, :] + x[:, 1:2] * w[1:2, :] + b
    o_ref[...] = jnp.tanh(y).astype(o_ref.dtype)


def prepare_params(weight, bias):
    """One-time parameter preprocessing (hoisted out of the forward call).

    weight: (HIDDEN_SIZE, INPUT_SIZE) f32 (PyTorch nn.Linear layout)
    bias:   (HIDDEN_SIZE,) f32
    Returns (w_pad: (INPUT_SIZE, H_PAD), b_pad: (1, H_PAD)), zero-padded.
    """
    w_t = weight.T.astype(jnp.float32)                       # (IN, H)
    w_pad = jnp.zeros((INPUT_SIZE, H_PAD), jnp.float32).at[:, :HIDDEN_SIZE].set(w_t)
    b_pad = jnp.zeros((1, H_PAD), jnp.float32).at[:, :HIDDEN_SIZE].set(
        bias.astype(jnp.float32))
    return w_pad, b_pad


def single_layer_perceptron(x, w_pad, b_pad):
    """x: (B, INPUT_SIZE) f32. Returns (B, HIDDEN_SIZE) f32."""
    B = x.shape[0]

    # Batch tile: multiple of 8 sublanes, capped at 1024 rows
    # (1024 x 384 f32 out tile = 1.5 MiB; x2 double-buffering stays tiny
    #  even under v7x's 32 MiB scoped-VMEM default).
    TB = min(1024, max(8, ((B + 7) // 8) * 8))
    grid = (pl.cdiv(B, TB),)

    cost = pl.CostEstimate(
        flops=2 * B * INPUT_SIZE * HIDDEN_SIZE + B * HIDDEN_SIZE,
        transcendentals=B * HIDDEN_SIZE,
        bytes_accessed=4 * (B * INPUT_SIZE + INPUT_SIZE * H_PAD + H_PAD + B * H_PAD),
    )

    out_pad = pl.pallas_call(
        slp_kernel,
        out_shape=jax.ShapeDtypeStruct((B, H_PAD), jnp.float32),
        grid_spec=pltpu.PrefetchScalarGridSpec(
            num_scalar_prefetch=0,
            grid=grid,
            in_specs=[
                pl.BlockSpec((TB, INPUT_SIZE), lambda i: (i, 0)),
                pl.BlockSpec((INPUT_SIZE, H_PAD), lambda i: (0, 0)),
                pl.BlockSpec((1, H_PAD), lambda i: (0, 0)),
            ],
            out_specs=pl.BlockSpec((TB, H_PAD), lambda i: (i, 0)),
        ),
        compiler_params=pltpu.CompilerParams(
            dimension_semantics=("parallel",)),
        cost_estimate=cost,
    )(x, w_pad, b_pad)

    # Drop the zero-padded columns (tanh(0 + 0) = 0 there) outside the kernel.
    return out_pad[:, :HIDDEN_SIZE]


if __name__ == "__main__":
    key = jax.random.PRNGKey(0)
    kx, kw, kb = jax.random.split(key, 3)

    batch = 8
    x = jax.random.normal(kx, (batch, INPUT_SIZE), dtype=jnp.float32)

    # Deterministic parameters (nn.Linear-style uniform(-1/sqrt(in), 1/sqrt(in)))
    bound = 1.0 / (INPUT_SIZE ** 0.5)
    weight = jax.random.uniform(
        kw, (HIDDEN_SIZE, INPUT_SIZE), dtype=jnp.float32, minval=-bound, maxval=bound)
    bias = jax.random.uniform(
        kb, (HIDDEN_SIZE,), dtype=jnp.float32, minval=-bound, maxval=bound)

    # One-time param prep (transpose + pad), then the forward call.
    w_pad, b_pad = prepare_params(weight, bias)
    out = single_layer_perceptron(x, w_pad, b_pad)
    out = jax.block_until_ready(out)

    # Reference in plain JAX with true-f32 matmul (kernel does exact f32 FMAs).
    ref = jnp.tanh(
        jnp.dot(x, weight.T, precision=jax.lax.Precision.HIGHEST) + bias)
    assert out.shape == (batch, HIDDEN_SIZE)
    assert jnp.allclose(out, ref, atol=1e-5, rtol=1e-5)

    print("KERNEL_OK")
</pallas_src>

<mosaic_0001>
module attributes {stable_mosaic.version = 11 : i64} {
  func.func @slp_kernel(%arg0: i32, %arg1: memref<8x2xf32, #tpu.memory_space<vmem>>, %arg2: memref<2x384xf32, #tpu.memory_space<vmem>>, %arg3: memref<1x384xf32, #tpu.memory_space<vmem>>, %arg4: memref<8x384xf32, #tpu.memory_space<vmem>>) attributes {dimension_semantics = [#tpu.dimension_semantics<parallel>], iteration_bounds = array<i64: 1>, scalar_prefetch = 0 : i64, scratch_operands = 0 : i64, tpu.core_type = #tpu.core_type<tc>, window_params = [{transform_indices = @transform_0, window_bounds = array<i64: 8, 2>}, {pipeline_mode = #tpu.pipeline_mode<synchronous>, transform_indices = @transform_1, window_bounds = array<i64: 2, 384>}, {pipeline_mode = #tpu.pipeline_mode<synchronous>, transform_indices = @transform_2, window_bounds = array<i64: 1, 384>}, {transform_indices = @transform_3, window_bounds = array<i64: 8, 384>}]} {
    %c0 = arith.constant 0 : index
    %c0_0 = arith.constant 0 : index
    %0 = vector.load %arg1[%c0, %c0_0] : memref<8x2xf32, #tpu.memory_space<vmem>>, vector<8x2xf32>
    %c0_1 = arith.constant 0 : index
    %c0_2 = arith.constant 0 : index
    %1 = vector.load %arg2[%c0_1, %c0_2] : memref<2x384xf32, #tpu.memory_space<vmem>>, vector<2x384xf32>
    %c0_3 = arith.constant 0 : index
    %c0_4 = arith.constant 0 : index
    %2 = vector.load %arg3[%c0_3, %c0_4] : memref<1x384xf32, #tpu.memory_space<vmem>>, vector<1x384xf32>
    %3 = vector.extract_strided_slice %0 {offsets = [0, 0], sizes = [8, 1], strides = [1, 1]} : vector<8x2xf32> to vector<8x1xf32>
    %4 = vector.extract_strided_slice %1 {offsets = [0, 0], sizes = [1, 384], strides = [1, 1]} : vector<2x384xf32> to vector<1x384xf32>
    %5 = vector.broadcast %3 : vector<8x1xf32> to vector<8x384xf32>
    %6 = vector.broadcast %4 : vector<1x384xf32> to vector<8x384xf32>
    %7 = arith.mulf %5, %6 : vector<8x384xf32>
    %8 = vector.extract_strided_slice %0 {offsets = [0, 1], sizes = [8, 1], strides = [1, 1]} : vector<8x2xf32> to vector<8x1xf32>
    %9 = vector.extract_strided_slice %1 {offsets = [1, 0], sizes = [1, 384], strides = [1, 1]} : vector<2x384xf32> to vector<1x384xf32>
    %10 = vector.broadcast %8 : vector<8x1xf32> to vector<8x384xf32>
    %11 = vector.broadcast %9 : vector<1x384xf32> to vector<8x384xf32>
    %12 = arith.mulf %10, %11 : vector<8x384xf32>
    %13 = arith.addf %7, %12 : vector<8x384xf32>
    %14 = vector.broadcast %2 : vector<1x384xf32> to vector<8x384xf32>
    %15 = arith.addf %13, %14 : vector<8x384xf32>
    %16 = math.tanh %15 : vector<8x384xf32>
    %c0_5 = arith.constant 0 : index
    %c0_6 = arith.constant 0 : index
    %17 = vector.load %arg4[%c0_5, %c0_6] : memref<8x384xf32, #tpu.memory_space<vmem>>, vector<8x384xf32>
    tpu.vector_store %arg4[%c0_5, %c0_6], %16 {strides = array<i32>} : memref<8x384xf32, #tpu.memory_space<vmem>>, vector<8x384xf32>,
    return
  }
  func.func @transform_0(%arg0: i32) -> (i32, i32) {
    %c0_i32 = arith.constant 0 : i32
    %c0_i32_0 = arith.constant 0 : i32
    return %arg0, %c0_i32 : i32, i32
  }
  func.func @transform_1(%arg0: i32) -> (i32, i32) {
    %c0_i32 = arith.constant 0 : i32
    %c0_i32_0 = arith.constant 0 : i32
    %c0_i32_1 = arith.constant 0 : i32
    return %c0_i32, %c0_i32_0 : i32, i32
  }
  func.func @transform_2(%arg0: i32) -> (i32, i32) {
    %c0_i32 = arith.constant 0 : i32
    %c0_i32_0 = arith.constant 0 : i32
    %c0_i32_1 = arith.constant 0 : i32
    return %c0_i32, %c0_i32_0 : i32, i32
  }
  func.func @transform_3(%arg0: i32) -> (i32, i32) {
    %c0_i32 = arith.constant 0 : i32
    %c0_i32_0 = arith.constant 0 : i32
    return %arg0, %c0_i32 : i32, i32
  }
}

</mosaic_0001>

<llo_original>
// kernel: tpu_custom_call.1
$region0: #{tpu_custom_call.1}
  #allocation0 [shape = 'u32[]', space=smem, size = 0x4, offset = 0x4, fixed_abs, tag = 'smem constant byte address 0x4 - core index']
  #allocation1 [shape = 'u32[72,128]{1,0:T(1,128)}', space=vmem, size = 0x9000, scoped, tag = 'internal scratch']
  %s0 = inlined_call_operand.vmem [shape: f32[8,2], index: 0, kind: input, shape index: {}]
  %s1 = inlined_call_operand.vmem [shape: f32[2,384], index: 1, kind: input, shape index: {}]
  %s2 = inlined_call_operand.vmem [shape: f32[1,384], index: 2, kind: input, shape index: {}]
  %s3 = inlined_call_operand.hbm [shape: f32[8,384], index: 3, kind: output, shape index: {}]
  %s4 = sld [smem:[#allocation0]]
  $region22: #{tpu_custom_call.1} parent=0
    _
  %s6 = ssub.s32 1, %s4
  %s7 = scalar_select 0, %s6, %s4
  $region1: #{tpu_custom_call.1} parent=0
    #allocation2 [shape = 'u8[12288]{0}', space=vmem, size = 0x3000, scoped, tag = 'output window, operand 0, single buffered']
    #allocation3 [shape = 's32[1]{0}', space=sflag, size = 0x4, scoped, tag = 'scoped memory for tpu_custom_call.1']
    %8 = vsyncpa [#allocation3], 0
    // Predicated region
    $region2: #{tpu_custom_call.1} parent=1 // pred_check
      _
    $region3: #{tpu_custom_call.1} parent=1 // pred_check_branch
      %10 = sbr.rel (0) target = $region5
    $region4: #{tpu_custom_call.1} parent=1 // pred_region
      _
    $region5: #{tpu_custom_call.1} parent=1 // pred_fallthru
      _
    // Predicated region
    $region6: #{tpu_custom_call.1} parent=1 // pred_check
      _
    $region7: #{tpu_custom_call.1} parent=1 // pred_check_branch
      %12 = sbr.rel (0) target = $region9
    $region8: #{tpu_custom_call.1} parent=1 // pred_region
      _
    $region9: #{tpu_custom_call.1} parent=1 // pred_fallthru
      _
    // Predicated region
    $region10: #{tpu_custom_call.1} parent=1 // pred_check
      _
    $region11: #{tpu_custom_call.1} parent=1 // pred_check_branch
      %14 = sbr.rel (0) target = $region13
    $region12: #{tpu_custom_call.1} parent=1 // pred_region
      _
    $region13: #{tpu_custom_call.1} parent=1 // pred_fallthru
      _
    %v15 = vld [vmem:[%s0] sm:$0xff]
    %v16 = vld [vmem:[%s1] sm:$0x3f]
    %v17 = vld [vmem:[%s2] sm:$0x7]
    %19 = vset.pattern.permute.xlu0 0
    %20 = vperm.xlu0 %19, %v15
    %v21 = vpop.permute.xlu0 %20
    %v24 = vperm.slane %v16, 0
    %v25 = vperm.slane %v16, 2
    %v26 = vperm.slane %v16, 4
    %v30 = vperm.slane %v24, 0
    %v31 = vperm.slane %v25, 0
    %v32 = vperm.slane %v26, 0
    %v33 = vmul.f32 %v21, %v30
    %v34 = vmul.f32 %v21, %v31
    %v35 = vmul.f32 %v21, %v32
    %36 = vset.pattern.permute.xlu0 1
    %37 = vperm.xlu0 %36, %v15
    %v38 = vpop.permute.xlu0 %37
    %v40 = vperm.slane %v16, 1
    %v41 = vperm.slane %v16, 3
    %v42 = vperm.slane %v16, 5
    %v46 = vperm.slane %v40, 1
    %v47 = vperm.slane %v41, 1
    %v48 = vperm.slane %v42, 1
    %v49 = vmul.f32 %v38, %v46
    %v50 = vmul.f32 %v38, %v47
    %v51 = vmul.f32 %v38, %v48
    %v52 = vadd.f32 %v33, %v49
    %v53 = vadd.f32 %v34, %v50
    %v54 = vadd.f32 %v35, %v51
    %v56 = vperm.slane %v17, 0
    %v57 = vperm.slane %v17, 1
    %v58 = vperm.slane %v17, 2
    %v62 = vadd.f32 %v52, %v56
    %v63 = vadd.f32 %v53, %v57
    %v64 = vadd.f32 %v54, %v58
    %v65 = vtanh.pop %v62
    %v66 = vtanh.pop %v63
    %v67 = vtanh.pop %v64
    %68 = vst [vmem:[#allocation2] sm:$0xff] %v65
    %69 = vst [vmem:[#allocation2 + $0x8] sm:$0xff] %v66
    %70 = vst [vmem:[#allocation2 + $0x10] sm:$0xff] %v67
    // Predicated region
    $region14: #{tpu_custom_call.1} parent=1 // pred_check
      _
    $region15: #{tpu_custom_call.1} parent=1 // pred_check_branch
      %72 = sbr.rel (0) target = $region17
    $region16: #{tpu_custom_call.1} parent=1 // pred_region
      %74 = vsyncadd [#allocation3], 0
      %s76 = sshll.u32 [#allocation2], 4
      %s77 = int_to_ptr.vmem [resolvable:$true] %s76
      %s78 = sshll.u32 %s3, 4
      %s79 = int_to_ptr.hbm [resolvable:$true] %s78
      %81 = dma.vmem_to_hbm [thread:$0]  %s77, 384, %s79, [#allocation3]
    $region17: #{tpu_custom_call.1} parent=1 // pred_fallthru
      _
    // Predicated region
    $region18: #{tpu_custom_call.1} parent=1 // pred_check
      _
    $region19: #{tpu_custom_call.1} parent=1 // pred_check_branch
      %83 = sbr.rel (0) target = $region21
    $region20: #{tpu_custom_call.1} parent=1 // pred_region
      %85 = dma.done [#allocation3], 384
    $region21: #{tpu_custom_call.1} parent=1 // pred_fallthru
      _
    %86 = vsyncpa [#allocation3], 1

</llo_original>
